<compile_context>
chip_gen: v5e
topology: v5e:2x2
jax: 0.10.0
libtpu: 0.0.40
codegen_flags: <defaults>
</compile_context>

<pallas_src>
import jax
import jax.numpy as jnp
import numpy as np
from jax import lax
from jax.experimental import pallas as pl
from jax.experimental.pallas import tpu as pltpu


def _segrnn_kernel(x_seg_ref, seq_last_ref, dec_ref,
                   emb_w_ref, emb_b_ref,
                   w_ih_ref, w_hh_ref, b_rzn_ref, b_hn_ref,
                   pred_w_ref, pred_b_ref,
                   y_ref, e_ref):
    seg_num_x, rows, seg_len = x_seg_ref.shape
    d_model = w_hh_ref.shape[0]
    seg_num_y = dec_ref.shape[0] // rows
    cdt = w_ih_ref.dtype                      # MXU-input dtype (bf16 here), f32 accumulation

    w_ih = w_ih_ref[...]                      # (d_model, 3*d_model), gate order [r | z | n]
    w_hh = w_hh_ref[...]                      # (d_model, 3*d_model)
    b_rzn = b_rzn_ref[...]                    # (1, 3*d_model): [b_ir+b_hr | b_iz+b_hz | b_in]
    b_hn = b_hn_ref[...]                      # (1, d_model)

    def gru_step(x_c, h):
        # x_c is already in compute dtype; h and all elementwise gate math stay f32.
        gi = jnp.dot(x_c, w_ih, preferred_element_type=jnp.float32) + b_rzn
        gh = jnp.dot(h.astype(cdt), w_hh, preferred_element_type=jnp.float32)
        rz = jax.nn.sigmoid(gi[:, :2 * d_model] + gh[:, :2 * d_model])
        r = rz[:, :d_model]
        z = rz[:, d_model:]
        n = jnp.tanh(gi[:, 2 * d_model:] + r * (gh[:, 2 * d_model:] + b_hn))
        return (1.0 - z) * n + z * h

    # ---- value embedding (Linear + ReLU), hoisted off the recurrent critical path ----
    emb_w = emb_w_ref[...]
    emb_b = emb_b_ref[...]
    for t in range(seg_num_x):                # static; each iteration one clean 2D MXU op
        e_t = jnp.dot(x_seg_ref[t], emb_w, preferred_element_type=jnp.float32) + emb_b
        e_ref[t] = jnp.maximum(e_t, 0.0).astype(e_ref.dtype)

    # ---- encoder GRU over seg_num_x segments (the only truly serial work) ----
    h0 = jnp.zeros((rows, d_model), jnp.float32)
    h = lax.fori_loop(0, seg_num_x, lambda t, h: gru_step(e_ref[t], h), h0,
                      unroll=(seg_num_x <= 8))

    # ---- decoder: ONE batched GRU step over all (output-segment, row) pairs ----
    h_rep = jnp.concatenate([h] * seg_num_y, axis=0)          # (seg_num_y*rows, d_model)
    hy = gru_step(dec_ref[...], h_rep)                        # dec rows: y-major, then row
    out = jnp.dot(hy.astype(cdt), pred_w_ref[...],
                  preferred_element_type=jnp.float32) + pred_b_ref[...]
    # out row (y*rows + r) holds output segment y for block row r; pack segments on lanes
    # and do a single lane-dense (rows, n_pred_steps) store.
    parts = [out[y * rows:(y + 1) * rows, :] for y in range(seg_num_y)]
    y_ref[...] = jnp.concatenate(parts, axis=-1) + seq_last_ref[...]


def _pick_block_rows(B, C, target_rows=256):
    """Largest row block = bb*C (bb | B) that is <= target and sublane-friendly."""
    N = B * C
    best = N
    for bb in range(B, 0, -1):
        if B % bb:
            continue
        rows = bb * C
        if rows <= target_rows and (rows % 32 == 0 or rows == N):
            best = rows
            break
    return best


def backbone_segrnn_forward(x, params, *, seg_len, d_model,
                            compute_dtype=jnp.bfloat16, block_rows=None):
    """x: (B, n_steps, n_features) float32 -> (B, n_pred_steps, n_features)."""
    B, L, C = x.shape
    seg_num_x = L // seg_len
    pos_emb = params["pos_emb"]          # (seg_num_y, d_model//2)
    channel_emb = params["channel_emb"]  # (C, d_model//2)
    seg_num_y = pos_emb.shape[0]
    n_pred = seg_num_y * seg_len
    N = B * C
    d2 = d_model // 2

    if block_rows is None:
        block_rows = _pick_block_rows(B, C)
    grid = (N // block_rows,)
    bb = block_rows // C

    # --- glue: normalization / segmentation (plain JAX) ---
    seq_last = x[:, -1:, :]                                      # (B, 1, C) f32
    xn = jnp.transpose(x - seq_last, (0, 2, 1)).reshape(N, seg_num_x, seg_len)
    # time-major layout so every time step is a contiguous (block_rows, seg_len) tile
    x_seg = jnp.transpose(xn, (1, 0, 2)).astype(compute_dtype)   # (seg_num_x, N, seg_len)
    seq_last_flat = jnp.transpose(seq_last, (0, 2, 1)).reshape(N, 1).astype(jnp.float32)

    # --- small, batch-independent decoder-input table (identical for every row block):
    #     row (y*block_rows + bi*C + c) = concat(pos_emb[y], channel_emb[c]) ---
    dec_yc = jnp.concatenate([
        jnp.broadcast_to(pos_emb[:, None, :], (seg_num_y, C, d2)),
        jnp.broadcast_to(channel_emb[None, :, :], (seg_num_y, C, d2)),
    ], axis=-1)                                                  # (seg_num_y, C, d_model)
    dec_block = jnp.broadcast_to(dec_yc[:, None, :, :], (seg_num_y, bb, C, d_model))
    dec_block = dec_block.reshape(seg_num_y * block_rows, d_model).astype(compute_dtype)

    # --- fused GRU weights (gate order r, z, n) and pre-folded r/z biases ---
    w_ih = jnp.concatenate([params["w_ih"][g] for g in range(3)], axis=1).astype(compute_dtype)
    w_hh = jnp.concatenate([params["w_hh"][g] for g in range(3)], axis=1).astype(compute_dtype)
    b_rzn = jnp.concatenate([
        params["b_ih"][0] + params["b_hh"][0],
        params["b_ih"][1] + params["b_hh"][1],
        params["b_ih"][2],
    ], axis=1).astype(jnp.float32)                               # (1, 3*d_model)
    b_hn = params["b_hh"][2].astype(jnp.float32)                 # (1, d_model)
    emb_w = params["emb_w"].astype(compute_dtype)
    emb_b = params["emb_b"].astype(jnp.float32)
    pred_w = params["pred_w"].astype(compute_dtype)
    pred_b = params["pred_b"].astype(jnp.float32)

    def _replicated(shape):
        nd = len(shape)
        return pl.BlockSpec(shape, lambda *_: (0,) * nd)

    in_specs = [
        pl.BlockSpec((seg_num_x, block_rows, seg_len), lambda i: (0, i, 0)),
        pl.BlockSpec((block_rows, 1), lambda i: (i, 0)),
        _replicated((seg_num_y * block_rows, d_model)),
        _replicated((seg_len, d_model)),
        _replicated((1, d_model)),
        _replicated((d_model, 3 * d_model)),
        _replicated((d_model, 3 * d_model)),
        _replicated((1, 3 * d_model)),
        _replicated((1, d_model)),
        _replicated((d_model, seg_len)),
        _replicated((1, seg_len)),
    ]
    out_specs = pl.BlockSpec((block_rows, n_pred), lambda i: (i, 0))

    y_flat = pl.pallas_call(
        _segrnn_kernel,
        out_shape=jax.ShapeDtypeStruct((N, n_pred), jnp.float32),
        grid=grid,
        in_specs=in_specs,
        out_specs=out_specs,
        scratch_shapes=[pltpu.VMEM((seg_num_x, block_rows, d_model), compute_dtype)],
        compiler_params=pltpu.CompilerParams(dimension_semantics=("parallel",)),
    )(x_seg, seq_last_flat, dec_block,
      emb_w, emb_b, w_ih, w_hh, b_rzn, b_hn, pred_w, pred_b)

    y = y_flat.reshape(B, C, n_pred)                             # rows were (b*C + c)
    return jnp.transpose(y, (0, 2, 1))                           # (B, n_pred_steps, C)


def init_params(key, n_features, seg_len, d_model, seg_num_y):
    """Deterministic synthetic parameters (shapes match the PyTorch module)."""
    ks = jax.random.split(key, 10)
    s_emb = 1.0 / np.sqrt(seg_len)
    s_rnn = 1.0 / np.sqrt(d_model)
    u = lambda k, shape, s: jax.random.uniform(k, shape, jnp.float32, -s, s)
    return {
        # valueEmbedding: Linear(seg_len -> d_model) stored as (in, out)
        "emb_w": u(ks[0], (seg_len, d_model), s_emb),
        "emb_b": u(ks[1], (1, d_model), s_emb),
        # GRU: gate order (r, z, n); weights stored as (3, in, out)
        "w_ih": u(ks[2], (3, d_model, d_model), s_rnn),
        "w_hh": u(ks[3], (3, d_model, d_model), s_rnn),
        "b_ih": u(ks[4], (3, 1, d_model), s_rnn),
        "b_hh": u(ks[5], (3, 1, d_model), s_rnn),
        # positional / channel embeddings (torch.randn)
        "pos_emb": jax.random.normal(ks[6], (seg_num_y, d_model // 2), jnp.float32),
        "channel_emb": jax.random.normal(ks[7], (n_features, d_model // 2), jnp.float32),
        # predict: Linear(d_model -> seg_len) stored as (in, out)
        "pred_w": u(ks[8], (d_model, seg_len), s_rnn),
        "pred_b": u(ks[9], (1, seg_len), s_rnn),
    }


def reference_forward(x, params, *, seg_len, d_model, compute_dtype=jnp.bfloat16):
    """Pure-JAX reference mirroring the PyTorch forward with the same precision policy
    (bf16 MXU inputs, f32 accumulation, f32 gate math; dropout = identity)."""
    B, L, C = x.shape
    seg_num_x = L // seg_len
    seg_num_y = params["pos_emb"].shape[0]
    d2 = d_model // 2
    cdt = compute_dtype

    def mm(a, w):
        return jnp.dot(a.astype(cdt), w.astype(cdt), preferred_element_type=jnp.float32)

    seq_last = x[:, -1:, :]
    xn = jnp.transpose(x - seq_last, (0, 2, 1)).reshape(B * C, seg_num_x, seg_len)
    e = jax.nn.relu(mm(xn.reshape(-1, seg_len), params["emb_w"]) + params["emb_b"])
    e = e.reshape(B * C, seg_num_x, d_model)

    def gru_step(xt, h):
        r = jax.nn.sigmoid(mm(xt, params["w_ih"][0]) + params["b_ih"][0]
                           + mm(h, params["w_hh"][0]) + params["b_hh"][0])
        z = jax.nn.sigmoid(mm(xt, params["w_ih"][1]) + params["b_ih"][1]
                           + mm(h, params["w_hh"][1]) + params["b_hh"][1])
        n = jnp.tanh(mm(xt, params["w_ih"][2]) + params["b_ih"][2]
                     + r * (mm(h, params["w_hh"][2]) + params["b_hh"][2]))
        return (1.0 - z) * n + z * h

    h = jnp.zeros((B * C, d_model), jnp.float32)
    for t in range(seg_num_x):
        h = gru_step(e[:, t, :], h)

    pe = jnp.broadcast_to(params["pos_emb"][None, :, :], (C, seg_num_y, d2))
    ce = jnp.broadcast_to(params["channel_emb"][:, None, :], (C, seg_num_y, d2))
    dec = jnp.concatenate([pe, ce], -1).reshape(C * seg_num_y, d_model)
    dec = jnp.tile(dec, (B, 1))                                  # (B*C*seg_num_y, d_model)
    h0 = jnp.repeat(h, seg_num_y, axis=0)
    hy = gru_step(dec, h0)
    yy = mm(hy, params["pred_w"]) + params["pred_b"]
    yy = yy.reshape(B, C, seg_num_y * seg_len)
    return jnp.transpose(yy, (0, 2, 1)) + seq_last


if __name__ == "__main__":
    # small shapes consistent with the module: n_steps % seg_len == 0, n_pred % seg_len == 0
    B, n_steps, n_features = 2, 8, 4
    n_pred_steps, seg_len, d_model = 8, 4, 32
    seg_num_y = n_pred_steps // seg_len

    key = jax.random.PRNGKey(0)
    kx, kp = jax.random.split(key)
    x = jax.random.normal(kx, (B, n_steps, n_features), jnp.float32)
    params = init_params(kp, n_features, seg_len, d_model, seg_num_y)

    y = backbone_segrnn_forward(x, params, seg_len=seg_len, d_model=d_model)
    y = jax.block_until_ready(y)

    assert y.shape == (B, n_pred_steps, n_features)
    y_ref = reference_forward(x, params, seg_len=seg_len, d_model=d_model)
    np.testing.assert_allclose(np.asarray(y), np.asarray(y_ref), rtol=1e-2, atol=1e-2)

    print("KERNEL_OK")
</pallas_src>

<mosaic_0001>
module attributes {stable_mosaic.version = 11 : i64} {
  func.func @_segrnn_kernel(%arg0: i32, %arg1: memref<2x8x4xbf16, #tpu.memory_space<vmem>>, %arg2: memref<8x1xf32, #tpu.memory_space<vmem>>, %arg3: memref<16x32xbf16, #tpu.memory_space<vmem>>, %arg4: memref<4x32xbf16, #tpu.memory_space<vmem>>, %arg5: memref<1x32xf32, #tpu.memory_space<vmem>>, %arg6: memref<32x96xbf16, #tpu.memory_space<vmem>>, %arg7: memref<32x96xbf16, #tpu.memory_space<vmem>>, %arg8: memref<1x96xf32, #tpu.memory_space<vmem>>, %arg9: memref<1x32xf32, #tpu.memory_space<vmem>>, %arg10: memref<32x4xbf16, #tpu.memory_space<vmem>>, %arg11: memref<1x4xf32, #tpu.memory_space<vmem>>, %arg12: memref<8x8xf32, #tpu.memory_space<vmem>>, %arg13: memref<2x8x32xbf16, #tpu.memory_space<vmem>>) attributes {dimension_semantics = [#tpu.dimension_semantics<parallel>], iteration_bounds = array<i64: 1>, scalar_prefetch = 0 : i64, scratch_operands = 1 : i64, tpu.core_type = #tpu.core_type<tc>, window_params = [{transform_indices = @transform_0, window_bounds = array<i64: 2, 8, 4>}, {transform_indices = @transform_1, window_bounds = array<i64: 8, 1>}, {pipeline_mode = #tpu.pipeline_mode<synchronous>, transform_indices = @transform_2, window_bounds = array<i64: 16, 32>}, {pipeline_mode = #tpu.pipeline_mode<synchronous>, transform_indices = @transform_3, window_bounds = array<i64: 4, 32>}, {pipeline_mode = #tpu.pipeline_mode<synchronous>, transform_indices = @transform_4, window_bounds = array<i64: 1, 32>}, {pipeline_mode = #tpu.pipeline_mode<synchronous>, transform_indices = @transform_5, window_bounds = array<i64: 32, 96>}, {pipeline_mode = #tpu.pipeline_mode<synchronous>, transform_indices = @transform_6, window_bounds = array<i64: 32, 96>}, {pipeline_mode = #tpu.pipeline_mode<synchronous>, transform_indices = @transform_7, window_bounds = array<i64: 1, 96>}, {pipeline_mode = #tpu.pipeline_mode<synchronous>, transform_indices = @transform_8, window_bounds = array<i64: 1, 32>}, {pipeline_mode = #tpu.pipeline_mode<synchronous>, transform_indices = @transform_9, window_bounds = array<i64: 32, 4>}, {pipeline_mode = #tpu.pipeline_mode<synchronous>, transform_indices = @transform_10, window_bounds = array<i64: 1, 4>}, {transform_indices = @transform_11, window_bounds = array<i64: 8, 8>}]} {
    %c0 = arith.constant 0 : index
    %c0_0 = arith.constant 0 : index
    %0 = vector.load %arg6[%c0, %c0_0] : memref<32x96xbf16, #tpu.memory_space<vmem>>, vector<32x96xbf16>
    %c0_1 = arith.constant 0 : index
    %c0_2 = arith.constant 0 : index
    %1 = vector.load %arg7[%c0_1, %c0_2] : memref<32x96xbf16, #tpu.memory_space<vmem>>, vector<32x96xbf16>
    %c0_3 = arith.constant 0 : index
    %c0_4 = arith.constant 0 : index
    %2 = vector.load %arg8[%c0_3, %c0_4] : memref<1x96xf32, #tpu.memory_space<vmem>>, vector<1x96xf32>
    %c0_5 = arith.constant 0 : index
    %c0_6 = arith.constant 0 : index
    %3 = vector.load %arg9[%c0_5, %c0_6] : memref<1x32xf32, #tpu.memory_space<vmem>>, vector<1x32xf32>
    %c0_7 = arith.constant 0 : index
    %c0_8 = arith.constant 0 : index
    %4 = vector.load %arg4[%c0_7, %c0_8] : memref<4x32xbf16, #tpu.memory_space<vmem>>, vector<4x32xbf16>
    %c0_9 = arith.constant 0 : index
    %c0_10 = arith.constant 0 : index
    %5 = vector.load %arg5[%c0_9, %c0_10] : memref<1x32xf32, #tpu.memory_space<vmem>>, vector<1x32xf32>
    %c0_11 = arith.constant 0 : index
    %c0_12 = arith.constant 0 : index
    %c0_13 = arith.constant 0 : index
    %6 = vector.load %arg1[%c0_11, %c0_12, %c0_13] : memref<2x8x4xbf16, #tpu.memory_space<vmem>>, vector<1x8x4xbf16>
    %7 = vector.shape_cast %6 : vector<1x8x4xbf16> to vector<8x4xbf16>
    %cst = arith.constant dense<0.000000e+00> : vector<8x32xf32>
    %8 = tpu.matmul %7, %4, %cst {dimension_numbers = #tpu.dot_dimension_numbers<[1], [0], [0], [1], [0, 0, 1, 1], [], []>} : vector<8x4xbf16>, vector<4x32xbf16>, vector<8x32xf32> -> vector<8x32xf32>
    %9 = vector.broadcast %5 : vector<1x32xf32> to vector<8x32xf32>
    %10 = arith.addf %8, %9 : vector<8x32xf32>
    %cst_14 = arith.constant 0.000000e+00 : f32
    %11 = vector.broadcast %cst_14 : f32 to vector<8x32xf32>
    %12 = arith.maximumf %10, %11 : vector<8x32xf32>
    %13 = arith.truncf %12 : vector<8x32xf32> to vector<8x32xbf16>
    %c0_15 = arith.constant 0 : index
    %c0_16 = arith.constant 0 : index
    %c0_17 = arith.constant 0 : index
    %14 = vector.load %arg13[%c0_15, %c0_16, %c0_17] : memref<2x8x32xbf16, #tpu.memory_space<vmem>>, vector<1x8x32xbf16>
    %15 = vector.shape_cast %14 : vector<1x8x32xbf16> to vector<8x32xbf16>
    %16 = vector.shape_cast %13 : vector<8x32xbf16> to vector<1x8x32xbf16>
    tpu.vector_store %arg13[%c0_15, %c0_16, %c0_17], %16 {strides = array<i32>} : memref<2x8x32xbf16, #tpu.memory_space<vmem>>, vector<1x8x32xbf16>,
    %c1 = arith.constant 1 : index
    %c0_18 = arith.constant 0 : index
    %c0_19 = arith.constant 0 : index
    %17 = vector.load %arg1[%c1, %c0_18, %c0_19] : memref<2x8x4xbf16, #tpu.memory_space<vmem>>, vector<1x8x4xbf16>
    %18 = vector.shape_cast %17 : vector<1x8x4xbf16> to vector<8x4xbf16>
    %cst_20 = arith.constant dense<0.000000e+00> : vector<8x32xf32>
    %19 = tpu.matmul %18, %4, %cst_20 {dimension_numbers = #tpu.dot_dimension_numbers<[1], [0], [0], [1], [0, 0, 1, 1], [], []>} : vector<8x4xbf16>, vector<4x32xbf16>, vector<8x32xf32> -> vector<8x32xf32>
    %20 = vector.broadcast %5 : vector<1x32xf32> to vector<8x32xf32>
    %21 = arith.addf %19, %20 : vector<8x32xf32>
    %cst_21 = arith.constant 0.000000e+00 : f32
    %22 = vector.broadcast %cst_21 : f32 to vector<8x32xf32>
    %23 = arith.maximumf %21, %22 : vector<8x32xf32>
    %24 = arith.truncf %23 : vector<8x32xf32> to vector<8x32xbf16>
    %c1_22 = arith.constant 1 : index
    %c0_23 = arith.constant 0 : index
    %c0_24 = arith.constant 0 : index
    %25 = vector.load %arg13[%c1_22, %c0_23, %c0_24] : memref<2x8x32xbf16, #tpu.memory_space<vmem>>, vector<1x8x32xbf16>
    %26 = vector.shape_cast %25 : vector<1x8x32xbf16> to vector<8x32xbf16>
    %27 = vector.shape_cast %24 : vector<8x32xbf16> to vector<1x8x32xbf16>
    tpu.vector_store %arg13[%c1_22, %c0_23, %c0_24], %27 {strides = array<i32>} : memref<2x8x32xbf16, #tpu.memory_space<vmem>>, vector<1x8x32xbf16>,
    %cst_25 = arith.constant 0.000000e+00 : f32
    %28 = vector.broadcast %cst_25 : f32 to vector<8x32xf32>
    %c0_i32 = arith.constant 0 : i32
    %29 = arith.index_cast %c0_i32 : i32 to index
    %c0_26 = arith.constant 0 : index
    %c0_27 = arith.constant 0 : index
    %30 = vector.load %arg13[%29, %c0_26, %c0_27] : memref<2x8x32xbf16, #tpu.memory_space<vmem>>, vector<1x8x32xbf16>
    %31 = vector.shape_cast %30 : vector<1x8x32xbf16> to vector<8x32xbf16>
    %cst_28 = arith.constant dense<0.000000e+00> : vector<8x96xf32>
    %32 = tpu.matmul %31, %0, %cst_28 {dimension_numbers = #tpu.dot_dimension_numbers<[1], [0], [0], [1], [0, 0, 1, 1], [], []>} : vector<8x32xbf16>, vector<32x96xbf16>, vector<8x96xf32> -> vector<8x96xf32>
    %33 = vector.broadcast %2 : vector<1x96xf32> to vector<8x96xf32>
    %34 = arith.addf %32, %33 : vector<8x96xf32>
    %35 = arith.truncf %28 : vector<8x32xf32> to vector<8x32xbf16>
    %cst_29 = arith.constant dense<0.000000e+00> : vector<8x96xf32>
    %36 = tpu.matmul %35, %1, %cst_29 {dimension_numbers = #tpu.dot_dimension_numbers<[1], [0], [0], [1], [0, 0, 1, 1], [], []>} : vector<8x32xbf16>, vector<32x96xbf16>, vector<8x96xf32> -> vector<8x96xf32>
    %37 = vector.extract_strided_slice %34 {offsets = [0, 0], sizes = [8, 64], strides = [1, 1]} : vector<8x96xf32> to vector<8x64xf32>
    %38 = vector.extract_strided_slice %36 {offsets = [0, 0], sizes = [8, 64], strides = [1, 1]} : vector<8x96xf32> to vector<8x64xf32>
    %39 = arith.addf %37, %38 : vector<8x64xf32>
    %40 = arith.negf %39 : vector<8x64xf32>
    %41 = math.exp %40 : vector<8x64xf32>
    %cst_30 = arith.constant 1.000000e+00 : f32
    %42 = vector.broadcast %cst_30 : f32 to vector<8x64xf32>
    %43 = arith.addf %42, %41 : vector<8x64xf32>
    %44 = arith.divf %42, %43 : vector<8x64xf32>
    %45 = vector.extract_strided_slice %44 {offsets = [0, 0], sizes = [8, 32], strides = [1, 1]} : vector<8x64xf32> to vector<8x32xf32>
    %46 = vector.extract_strided_slice %44 {offsets = [0, 32], sizes = [8, 32], strides = [1, 1]} : vector<8x64xf32> to vector<8x32xf32>
    %47 = vector.extract_strided_slice %34 {offsets = [0, 64], sizes = [8, 32], strides = [1, 1]} : vector<8x96xf32> to vector<8x32xf32>
    %48 = vector.extract_strided_slice %36 {offsets = [0, 64], sizes = [8, 32], strides = [1, 1]} : vector<8x96xf32> to vector<8x32xf32>
    %49 = vector.broadcast %3 : vector<1x32xf32> to vector<8x32xf32>
    %50 = arith.addf %48, %49 : vector<8x32xf32>
    %51 = arith.mulf %45, %50 : vector<8x32xf32>
    %52 = arith.addf %47, %51 : vector<8x32xf32>
    %53 = math.tanh %52 : vector<8x32xf32>
    %cst_31 = arith.constant 1.000000e+00 : f32
    %54 = vector.broadcast %cst_31 : f32 to vector<8x32xf32>
    %55 = arith.subf %54, %46 : vector<8x32xf32>
    %56 = arith.mulf %55, %53 : vector<8x32xf32>
    %57 = arith.mulf %46, %28 : vector<8x32xf32>
    %58 = arith.addf %56, %57 : vector<8x32xf32>
    %c1_i32 = arith.constant 1 : i32
    %59 = arith.index_cast %c1_i32 : i32 to index
    %c0_32 = arith.constant 0 : index
    %c0_33 = arith.constant 0 : index
    %60 = vector.load %arg13[%59, %c0_32, %c0_33] : memref<2x8x32xbf16, #tpu.memory_space<vmem>>, vector<1x8x32xbf16>
    %61 = vector.shape_cast %60 : vector<1x8x32xbf16> to vector<8x32xbf16>
    %cst_34 = arith.constant dense<0.000000e+00> : vector<8x96xf32>
    %62 = tpu.matmul %61, %0, %cst_34 {dimension_numbers = #tpu.dot_dimension_numbers<[1], [0], [0], [1], [0, 0, 1, 1], [], []>} : vector<8x32xbf16>, vector<32x96xbf16>, vector<8x96xf32> -> vector<8x96xf32>
    %63 = vector.broadcast %2 : vector<1x96xf32> to vector<8x96xf32>
    %64 = arith.addf %62, %63 : vector<8x96xf32>
    %65 = arith.truncf %58 : vector<8x32xf32> to vector<8x32xbf16>
    %cst_35 = arith.constant dense<0.000000e+00> : vector<8x96xf32>
    %66 = tpu.matmul %65, %1, %cst_35 {dimension_numbers = #tpu.dot_dimension_numbers<[1], [0], [0], [1], [0, 0, 1, 1], [], []>} : vector<8x32xbf16>, vector<32x96xbf16>, vector<8x96xf32> -> vector<8x96xf32>
    %67 = vector.extract_strided_slice %64 {offsets = [0, 0], sizes = [8, 64], strides = [1, 1]} : vector<8x96xf32> to vector<8x64xf32>
    %68 = vector.extract_strided_slice %66 {offsets = [0, 0], sizes = [8, 64], strides = [1, 1]} : vector<8x96xf32> to vector<8x64xf32>
    %69 = arith.addf %67, %68 : vector<8x64xf32>
    %70 = arith.negf %69 : vector<8x64xf32>
    %71 = math.exp %70 : vector<8x64xf32>
    %cst_36 = arith.constant 1.000000e+00 : f32
    %72 = vector.broadcast %cst_36 : f32 to vector<8x64xf32>
    %73 = arith.addf %72, %71 : vector<8x64xf32>
    %74 = arith.divf %72, %73 : vector<8x64xf32>
    %75 = vector.extract_strided_slice %74 {offsets = [0, 0], sizes = [8, 32], strides = [1, 1]} : vector<8x64xf32> to vector<8x32xf32>
    %76 = vector.extract_strided_slice %74 {offsets = [0, 32], sizes = [8, 32], strides = [1, 1]} : vector<8x64xf32> to vector<8x32xf32>
    %77 = vector.extract_strided_slice %64 {offsets = [0, 64], sizes = [8, 32], strides = [1, 1]} : vector<8x96xf32> to vector<8x32xf32>
    %78 = vector.extract_strided_slice %66 {offsets = [0, 64], sizes = [8, 32], strides = [1, 1]} : vector<8x96xf32> to vector<8x32xf32>
    %79 = vector.broadcast %3 : vector<1x32xf32> to vector<8x32xf32>
    %80 = arith.addf %78, %79 : vector<8x32xf32>
    %81 = arith.mulf %75, %80 : vector<8x32xf32>
    %82 = arith.addf %77, %81 : vector<8x32xf32>
    %83 = math.tanh %82 : vector<8x32xf32>
    %cst_37 = arith.constant 1.000000e+00 : f32
    %84 = vector.broadcast %cst_37 : f32 to vector<8x32xf32>
    %85 = arith.subf %84, %76 : vector<8x32xf32>
    %86 = arith.mulf %85, %83 : vector<8x32xf32>
    %87 = arith.mulf %76, %58 : vector<8x32xf32>
    %88 = arith.addf %86, %87 : vector<8x32xf32>
    %c2_i32 = arith.constant 2 : i32
    %89 = tpu.concatenate %88, %88 in 0 : vector<8x32xf32>, vector<8x32xf32> -> vector<16x32xf32>
    %c0_38 = arith.constant 0 : index
    %c0_39 = arith.constant 0 : index
    %90 = vector.load %arg3[%c0_38, %c0_39] : memref<16x32xbf16, #tpu.memory_space<vmem>>, vector<16x32xbf16>
    %cst_40 = arith.constant dense<0.000000e+00> : vector<16x96xf32>
    %91 = tpu.matmul %90, %0, %cst_40 {dimension_numbers = #tpu.dot_dimension_numbers<[1], [0], [0], [1], [0, 0, 1, 1], [], []>} : vector<16x32xbf16>, vector<32x96xbf16>, vector<16x96xf32> -> vector<16x96xf32>
    %92 = vector.broadcast %2 : vector<1x96xf32> to vector<16x96xf32>
    %93 = arith.addf %91, %92 : vector<16x96xf32>
    %94 = arith.truncf %89 : vector<16x32xf32> to vector<16x32xbf16>
    %cst_41 = arith.constant dense<0.000000e+00> : vector<16x96xf32>
    %95 = tpu.matmul %94, %1, %cst_41 {dimension_numbers = #tpu.dot_dimension_numbers<[1], [0], [0], [1], [0, 0, 1, 1], [], []>} : vector<16x32xbf16>, vector<32x96xbf16>, vector<16x96xf32> -> vector<16x96xf32>
    %96 = vector.extract_strided_slice %93 {offsets = [0, 0], sizes = [16, 64], strides = [1, 1]} : vector<16x96xf32> to vector<16x64xf32>
    %97 = vector.extract_strided_slice %95 {offsets = [0, 0], sizes = [16, 64], strides = [1, 1]} : vector<16x96xf32> to vector<16x64xf32>
    %98 = arith.addf %96, %97 : vector<16x64xf32>
    %99 = arith.negf %98 : vector<16x64xf32>
    %100 = math.exp %99 : vector<16x64xf32>
    %cst_42 = arith.constant 1.000000e+00 : f32
    %101 = vector.broadcast %cst_42 : f32 to vector<16x64xf32>
    %102 = arith.addf %101, %100 : vector<16x64xf32>
    %103 = arith.divf %101, %102 : vector<16x64xf32>
    %104 = vector.extract_strided_slice %103 {offsets = [0, 0], sizes = [16, 32], strides = [1, 1]} : vector<16x64xf32> to vector<16x32xf32>
    %105 = vector.extract_strided_slice %103 {offsets = [0, 32], sizes = [16, 32], strides = [1, 1]} : vector<16x64xf32> to vector<16x32xf32>
    %106 = vector.extract_strided_slice %93 {offsets = [0, 64], sizes = [16, 32], strides = [1, 1]} : vector<16x96xf32> to vector<16x32xf32>
    %107 = vector.extract_strided_slice %95 {offsets = [0, 64], sizes = [16, 32], strides = [1, 1]} : vector<16x96xf32> to vector<16x32xf32>
    %108 = vector.broadcast %3 : vector<1x32xf32> to vector<16x32xf32>
    %109 = arith.addf %107, %108 : vector<16x32xf32>
    %110 = arith.mulf %104, %109 : vector<16x32xf32>
    %111 = arith.addf %106, %110 : vector<16x32xf32>
    %112 = math.tanh %111 : vector<16x32xf32>
    %cst_43 = arith.constant 1.000000e+00 : f32
    %113 = vector.broadcast %cst_43 : f32 to vector<16x32xf32>
    %114 = arith.subf %113, %105 : vector<16x32xf32>
    %115 = arith.mulf %114, %112 : vector<16x32xf32>
    %116 = arith.mulf %105, %89 : vector<16x32xf32>
    %117 = arith.addf %115, %116 : vector<16x32xf32>
    %118 = arith.truncf %117 : vector<16x32xf32> to vector<16x32xbf16>
    %c0_44 = arith.constant 0 : index
    %c0_45 = arith.constant 0 : index
    %119 = vector.load %arg10[%c0_44, %c0_45] : memref<32x4xbf16, #tpu.memory_space<vmem>>, vector<32x4xbf16>
    %cst_46 = arith.constant dense<0.000000e+00> : vector<16x4xf32>
    %120 = tpu.matmul %118, %119, %cst_46 {dimension_numbers = #tpu.dot_dimension_numbers<[1], [0], [0], [1], [0, 0, 1, 1], [], []>} : vector<16x32xbf16>, vector<32x4xbf16>, vector<16x4xf32> -> vector<16x4xf32>
    %c0_47 = arith.constant 0 : index
    %c0_48 = arith.constant 0 : index
    %121 = vector.load %arg11[%c0_47, %c0_48] : memref<1x4xf32, #tpu.memory_space<vmem>>, vector<1x4xf32>
    %122 = vector.broadcast %121 : vector<1x4xf32> to vector<16x4xf32>
    %123 = arith.addf %120, %122 : vector<16x4xf32>
    %124 = vector.extract_strided_slice %123 {offsets = [0, 0], sizes = [8, 4], strides = [1, 1]} : vector<16x4xf32> to vector<8x4xf32>
    %125 = vector.extract_strided_slice %123 {offsets = [8, 0], sizes = [8, 4], strides = [1, 1]} : vector<16x4xf32> to vector<8x4xf32>
    %126 = tpu.concatenate %124, %125 in 1 : vector<8x4xf32>, vector<8x4xf32> -> vector<8x8xf32>
    %c0_49 = arith.constant 0 : index
    %c0_50 = arith.constant 0 : index
    %127 = vector.load %arg2[%c0_49, %c0_50] : memref<8x1xf32, #tpu.memory_space<vmem>>, vector<8x1xf32>
    %128 = vector.broadcast %127 : vector<8x1xf32> to vector<8x8xf32>
    %129 = arith.addf %126, %128 : vector<8x8xf32>
    %c0_51 = arith.constant 0 : index
    %c0_52 = arith.constant 0 : index
    %130 = vector.load %arg12[%c0_51, %c0_52] : memref<8x8xf32, #tpu.memory_space<vmem>>, vector<8x8xf32>
    tpu.vector_store %arg12[%c0_51, %c0_52], %129 {strides = array<i32>} : memref<8x8xf32, #tpu.memory_space<vmem>>, vector<8x8xf32>,
    return
  }
  func.func @transform_0(%arg0: i32) -> (i32, i32, i32) {
    %c0_i32 = arith.constant 0 : i32
    %c0_i32_0 = arith.constant 0 : i32
    %c0_i32_1 = arith.constant 0 : i32
    return %c0_i32, %arg0, %c0_i32_0 : i32, i32, i32
  }
  func.func @transform_1(%arg0: i32) -> (i32, i32) {
    %c0_i32 = arith.constant 0 : i32
    %c0_i32_0 = arith.constant 0 : i32
    return %arg0, %c0_i32 : i32, i32
  }
  func.func @transform_2(%arg0: i32) -> (i32, i32) {
    %c0_i32 = arith.constant 0 : i32
    %c0_i32_0 = arith.constant 0 : i32
    %c0_i32_1 = arith.constant 0 : i32
    return %c0_i32, %c0_i32_0 : i32, i32
  }
  func.func @transform_3(%arg0: i32) -> (i32, i32) {
    %c0_i32 = arith.constant 0 : i32
    %c0_i32_0 = arith.constant 0 : i32
    %c0_i32_1 = arith.constant 0 : i32
    return %c0_i32, %c0_i32_0 : i32, i32
  }
  func.func @transform_4(%arg0: i32) -> (i32, i32) {
    %c0_i32 = arith.constant 0 : i32
    %c0_i32_0 = arith.constant 0 : i32
    %c0_i32_1 = arith.constant 0 : i32
    return %c0_i32, %c0_i32_0 : i32, i32
  }
  func.func @transform_5(%arg0: i32) -> (i32, i32) {
    %c0_i32 = arith.constant 0 : i32
    %c0_i32_0 = arith.constant 0 : i32
    %c0_i32_1 = arith.constant 0 : i32
    return %c0_i32, %c0_i32_0 : i32, i32
  }
  func.func @transform_6(%arg0: i32) -> (i32, i32) {
    %c0_i32 = arith.constant 0 : i32
    %c0_i32_0 = arith.constant 0 : i32
    %c0_i32_1 = arith.constant 0 : i32
    return %c0_i32, %c0_i32_0 : i32, i32
  }
  func.func @transform_7(%arg0: i32) -> (i32, i32) {
    %c0_i32 = arith.constant 0 : i32
    %c0_i32_0 = arith.constant 0 : i32
    %c0_i32_1 = arith.constant 0 : i32
    return %c0_i32, %c0_i32_0 : i32, i32
  }
  func.func @transform_8(%arg0: i32) -> (i32, i32) {
    %c0_i32 = arith.constant 0 : i32
    %c0_i32_0 = arith.constant 0 : i32
    %c0_i32_1 = arith.constant 0 : i32
    return %c0_i32, %c0_i32_0 : i32, i32
  }
  func.func @transform_9(%arg0: i32) -> (i32, i32) {
    %c0_i32 = arith.constant 0 : i32
    %c0_i32_0 = arith.constant 0 : i32
    %c0_i32_1 = arith.constant 0 : i32
    return %c0_i32, %c0_i32_0 : i32, i32
  }
  func.func @transform_10(%arg0: i32) -> (i32, i32) {
    %c0_i32 = arith.constant 0 : i32
    %c0_i32_0 = arith.constant 0 : i32
    %c0_i32_1 = arith.constant 0 : i32
    return %c0_i32, %c0_i32_0 : i32, i32
  }
  func.func @transform_11(%arg0: i32) -> (i32, i32) {
    %c0_i32 = arith.constant 0 : i32
    %c0_i32_0 = arith.constant 0 : i32
    return %arg0, %c0_i32 : i32, i32
  }
}

</mosaic_0001>

<llo_original>
// kernel: tpu_custom_call.1
$region0: #{tpu_custom_call.1}
  #allocation0 [shape = 'u32[]', space=smem, size = 0x4, offset = 0x4, fixed_abs, tag = 'smem constant byte address 0x4 - core index']
  #allocation1 [shape = 'u32[72,128]{1,0:T(1,128)}', space=vmem, size = 0x9000, scoped, tag = 'internal scratch']
  #allocation2 [shape = 'bf16[2,8,32]{2,1,0:T(8,128)(2,1)}', space=vmem, size = 0x1000, scoped, tag = 'scratch operand']
  %s0 = inlined_call_operand.vmem [shape: bf16[2,8,4], index: 0, kind: input, shape index: {}]
  %s1 = inlined_call_operand.vmem [shape: f32[8,1], index: 1, kind: input, shape index: {}]
  %s2 = inlined_call_operand.hbm [shape: bf16[16,32], index: 2, kind: input, shape index: {}]
  %s3 = inlined_call_operand.vmem [shape: bf16[4,32], index: 3, kind: input, shape index: {}]
  %s4 = inlined_call_operand.vmem [shape: f32[1,32], index: 4, kind: input, shape index: {}]
  %s5 = inlined_call_operand.vmem [shape: bf16[32,96], index: 5, kind: input, shape index: {}]
  %s6 = inlined_call_operand.vmem [shape: bf16[32,96], index: 6, kind: input, shape index: {}]
  %s7 = inlined_call_operand.vmem [shape: f32[1,96], index: 7, kind: input, shape index: {}]
  %s8 = inlined_call_operand.vmem [shape: f32[1,32], index: 8, kind: input, shape index: {}]
  %s9 = inlined_call_operand.vmem [shape: bf16[32,4], index: 9, kind: input, shape index: {}]
  %s10 = inlined_call_operand.vmem [shape: f32[1,4], index: 10, kind: input, shape index: {}]
  %s11 = inlined_call_operand.hbm [shape: f32[8,8], index: 11, kind: output, shape index: {}]
  %s12 = sld [smem:[#allocation0]]
  $region58: #{tpu_custom_call.1} parent=0
    _
  %s14 = ssub.s32 1, %s12
  %s15 = scalar_select 0, %s14, %s12
  $region1: #{tpu_custom_call.1} parent=0
    #allocation3 [shape = 'u8[4096]{0}', space=vmem, size = 0x1000, scoped, tag = 'input window, operand 2, single buffered']
    #allocation4 [shape = 's32[1]{0}', space=sflag, size = 0x4, scoped, tag = 'scoped memory for tpu_custom_call.1']
    #allocation5 [shape = 's32[1]{0}', space=sflag, size = 0x4, scoped, tag = 'scoped memory for tpu_custom_call.1']
    #allocation6 [shape = 'u8[4096]{0}', space=vmem, size = 0x1000, scoped, tag = 'output window, operand 0, single buffered']
    %16 = vsyncpa [#allocation4], 0
    %17 = vsyncpa [#allocation5], 0
    // Predicated region
    $region2: #{tpu_custom_call.1} parent=1 // pred_check
      _
    $region3: #{tpu_custom_call.1} parent=1 // pred_check_branch
      %19 = sbr.rel (0) target = $region5
    $region4: #{tpu_custom_call.1} parent=1 // pred_region
      _
    $region5: #{tpu_custom_call.1} parent=1 // pred_fallthru
      _
    // Predicated region
    $region6: #{tpu_custom_call.1} parent=1 // pred_check
      _
    $region7: #{tpu_custom_call.1} parent=1 // pred_check_branch
      %21 = sbr.rel (0) target = $region9
    $region8: #{tpu_custom_call.1} parent=1 // pred_region
      _
    $region9: #{tpu_custom_call.1} parent=1 // pred_fallthru
      _
    // Predicated region
    $region10: #{tpu_custom_call.1} parent=1 // pred_check
      _
    $region11: #{tpu_custom_call.1} parent=1 // pred_check_branch
      %23 = sbr.rel (0) target = $region13
    $region12: #{tpu_custom_call.1} parent=1 // pred_region
      %25 = vsyncadd [#allocation4], 0
      %s26 = sshll.u32 %s2, 4
      %s27 = int_to_ptr.hbm [resolvable:$true] %s26
      %s28 = sshll.u32 [#allocation3], 4
      %s29 = int_to_ptr.vmem [resolvable:$true] %s28
      %34 = dma.hbm_to_vmem [thread:$0]  %s27, 128, %s29, [#allocation4], 64, 64, 4
    $region13: #{tpu_custom_call.1} parent=1 // pred_fallthru
      _
    // Predicated region
    $region14: #{tpu_custom_call.1} parent=1 // pred_check
      _
    $region15: #{tpu_custom_call.1} parent=1 // pred_check_branch
      %36 = sbr.rel (0) target = $region17
    $region16: #{tpu_custom_call.1} parent=1 // pred_region
      _
    $region17: #{tpu_custom_call.1} parent=1 // pred_fallthru
      _
    // Predicated region
    $region18: #{tpu_custom_call.1} parent=1 // pred_check
      _
    $region19: #{tpu_custom_call.1} parent=1 // pred_check_branch
      %38 = sbr.rel (0) target = $region21
    $region20: #{tpu_custom_call.1} parent=1 // pred_region
      _
    $region21: #{tpu_custom_call.1} parent=1 // pred_fallthru
      _
    // Predicated region
    $region22: #{tpu_custom_call.1} parent=1 // pred_check
      _
    $region23: #{tpu_custom_call.1} parent=1 // pred_check_branch
      %40 = sbr.rel (0) target = $region25
    $region24: #{tpu_custom_call.1} parent=1 // pred_region
      _
    $region25: #{tpu_custom_call.1} parent=1 // pred_fallthru
      _
    // Predicated region
    $region26: #{tpu_custom_call.1} parent=1 // pred_check
      _
    $region27: #{tpu_custom_call.1} parent=1 // pred_check_branch
      %42 = sbr.rel (0) target = $region29
    $region28: #{tpu_custom_call.1} parent=1 // pred_region
      _
    $region29: #{tpu_custom_call.1} parent=1 // pred_fallthru
      _
    // Predicated region
    $region30: #{tpu_custom_call.1} parent=1 // pred_check
      _
    $region31: #{tpu_custom_call.1} parent=1 // pred_check_branch
      %44 = sbr.rel (0) target = $region33
    $region32: #{tpu_custom_call.1} parent=1 // pred_region
      _
    $region33: #{tpu_custom_call.1} parent=1 // pred_fallthru
      _
    // Predicated region
    $region34: #{tpu_custom_call.1} parent=1 // pred_check
      _
    $region35: #{tpu_custom_call.1} parent=1 // pred_check_branch
      %46 = sbr.rel (0) target = $region37
    $region36: #{tpu_custom_call.1} parent=1 // pred_region
      _
    $region37: #{tpu_custom_call.1} parent=1 // pred_fallthru
      _
    // Predicated region
    $region38: #{tpu_custom_call.1} parent=1 // pred_check
      _
    $region39: #{tpu_custom_call.1} parent=1 // pred_check_branch
      %48 = sbr.rel (0) target = $region41
    $region40: #{tpu_custom_call.1} parent=1 // pred_region
      _
    $region41: #{tpu_custom_call.1} parent=1 // pred_fallthru
      _
    // Predicated region
    $region42: #{tpu_custom_call.1} parent=1 // pred_check
      _
    $region43: #{tpu_custom_call.1} parent=1 // pred_check_branch
      %50 = sbr.rel (0) target = $region45
    $region44: #{tpu_custom_call.1} parent=1 // pred_region
      _
    $region45: #{tpu_custom_call.1} parent=1 // pred_fallthru
      _
    // Predicated region
    $region46: #{tpu_custom_call.1} parent=1 // pred_check
      _
    $region47: #{tpu_custom_call.1} parent=1 // pred_check_branch
      %52 = sbr.rel (0) target = $region49
    $region48: #{tpu_custom_call.1} parent=1 // pred_region
      %54 = dma.done [#allocation4], 128
    $region49: #{tpu_custom_call.1} parent=1 // pred_fallthru
      _
    %v56 = vld [vmem:[%s5] sm:$0xf]
    %v57 = vld [vmem:[%s5 + $0x4] sm:$0xf]
    %v58 = vld [vmem:[%s5 + $0x8] sm:$0xf]
    %v59 = vld [vmem:[%s5 + $0xc] sm:$0xf]
    %v60 = vld [vmem:[%s6] sm:$0xf]
    %v61 = vld [vmem:[%s6 + $0x4] sm:$0xf]
    %v62 = vld [vmem:[%s6 + $0x8] sm:$0xf]
    %v63 = vld [vmem:[%s6 + $0xc] sm:$0xf]
    %v64 = vld [vmem:[%s7] sm:$0x1]
    %v65 = vld [vmem:[%s8] sm:$0x1]
    %v66 = vld [vmem:[%s3] sm:$0x3]
    %v67 = vld [vmem:[%s4] sm:$0x1]
    %v68 = vld [vmem:[%s0] sm:$0xf]
    %v70 = vperm.slane %v67, 0
    %vm72 = vcmask 31744
    %v74 = vsel %vm72, %v68, 0
    %vm76 = vcmask 1041408
    %v78 = vsel %vm76, %v66, 0
    %80 = vmatpush.bf16.msra.mxu0 0
    %81 = vmatpush.bf16.msra.mxu0 0
    %82 = vmatpush.bf16.msra.mxu0 0
    %83 = vmatpush.bf16.msra.mxu0 0
    %84 = vmatpush.bf16.msra.mxu0 0
    %85 = vmatpush.bf16.msra.mxu0 0
    %86 = vmatpush.bf16.msra.mxu0 0
    %87 = vmatpush.bf16.msra.mxu0 %v78
    %88 = vmatmul.bf16.gmra.mxu0 %v74
    %v89 = vpop.f32.mrf.mxu0
    %v90 = vadd.f32 %v70, %v89
    %v91 = vpop.f32.mrf.mxu0
    %92 = vdwg.mxu0
    %v93 = vmax.f32 %v90, 0.0
    %v94 = vpack.c.bf16 %v93, %v93
    %vm95 = vcmask 257024
    %96 = vst.msk [vmem:[#allocation2] sm:$0xf] %vm95, %v94
    %s97 = scalar_lea.vmem %s0, 4
    %v98 = vld [vmem:[%s97] sm:$0xf]
    %v100 = vsel %vm72, %v98, 0
    %102 = vmatpush.bf16.msra.mxu0 0
    %103 = vmatpush.bf16.msra.mxu0 0
    %104 = vmatpush.bf16.msra.mxu0 0
    %105 = vmatpush.bf16.msra.mxu0 0
    %106 = vmatpush.bf16.msra.mxu0 0
    %107 = vmatpush.bf16.msra.mxu0 0
    %108 = vmatpush.bf16.msra.mxu0 0
    %109 = vmatpush.bf16.msra.mxu0 %v78
    %110 = vmatmul.bf16.gmra.mxu0 %v100
    %v111 = vpop.f32.mrf.mxu0
    %v112 = vadd.f32 %v70, %v111
    %v113 = vpop.f32.mrf.mxu0
    %114 = vdwg.mxu0
    %v115 = vmax.f32 %v112, 0.0
    %v116 = vpack.c.bf16 %v115, %v115
    %s117 = scalar_lea.vmem [#allocation2], 4
    %118 = vst.msk [vmem:[%s117] sm:$0xf] %vm95, %v116
    %v119 = vld [vmem:[#allocation2] sm:$0xf]
    %v121 = vperm.slane %v64, 0
    %v127 = vunpack.c.l.b16 %v56
    %v128 = vunpack.c.l.b16 %v57
    %v129 = vunpack.c.l.b16 %v58
    %v130 = vunpack.c.l.b16 %v59
    %v131 = vpack.c.b16 %v128, %v127
    %v132 = vpack.c.b16 %v130, %v129
    %vm135 = vcmask 261120
    %v137 = vsel %vm135, %v119, 0
    %139 = vmatpush.bf16.msra.mxu0 0
    %140 = vmatpush.bf16.msra.mxu0 0
    %141 = vmatpush.bf16.msra.mxu0 0
    %142 = vmatpush.bf16.msra.mxu0 0
    %143 = vmatpush.bf16.msra.mxu0 0
    %144 = vmatpush.bf16.msra.mxu0 0
    %145 = vmatpush.bf16.msra.mxu0 %v132
    %146 = vmatpush.bf16.msra.mxu0 %v131
    %147 = vmatmul.bf16.gmra.mxu0 %v137
    %v148 = vpop.f32.mrf.mxu0
    %v149 = vadd.f32 %v121, %v148
    %v150 = vpop.f32.mrf.mxu0
    %151 = vdwg.mxu0
    %v156 = vunpack.c.l.b16 %v60
    %v157 = vunpack.c.l.b16 %v61
    %v158 = vunpack.c.l.b16 %v62
    %v159 = vunpack.c.l.b16 %v63
    %v160 = vpack.c.b16 %v157, %v156
    %v161 = vpack.c.b16 %v159, %v158
    %v165 = vsel %vm135, 0, 0
    %167 = vmatpush.bf16.msra.mxu0 0
    %168 = vmatpush.bf16.msra.mxu0 0
    %169 = vmatpush.bf16.msra.mxu0 0
    %170 = vmatpush.bf16.msra.mxu0 0
    %171 = vmatpush.bf16.msra.mxu0 0
    %172 = vmatpush.bf16.msra.mxu0 0
    %173 = vmatpush.bf16.msra.mxu0 %v161
    %174 = vmatpush.bf16.msra.mxu0 %v160
    %175 = vmatmul.bf16.gmra.mxu0 %v165
    %v176 = vpop.f32.mrf.mxu0
    %v177 = vadd.f32 0.0, %v176
    %v178 = vpop.f32.mrf.mxu0
    %179 = vdwg.mxu0
    %v180 = vadd.f32 %v149, %v177
    %v181 = vxor.u32 %v180, 2147483648
    %v182 = vmul.f32 %v181, 1.442695
    %v183 = vpow.pop %v182
    %v184 = vadd.f32 %v183, 1.0
    %v185 = vrcp.pop %v184
    %v186 = vmul.f32 %v184, %v185
    %v187 = vsub.f32 1.0, %v186
    %v188 = vmul.f32 %v185, %v187
    %v189 = vadd.f32 %v185, %v188
    %vm190 = vweird.f32 %v184
    %vm191 = vweird.f32 %v185
    %vm192 = vmor %vm190, %vm191
    %v193 = vsel %vm192, %v185, %v189
    %v194 = vand.u32 2147483647, %v184
    %vm195 = vcmp.eq.f32.partialorder %v194, 8.507059e+37
    %v196 = vand.u32 %v184, 2147483648
    %v197 = vor.u32 1.1754944e-38, %v196
    %v198 = vsel %vm195, %v197, %v193
    %v199 = vmul.f32 1.0, %v198
    %v201 = vperm.slane %v65, 0
    %202 = vrot.lane.b32.xlu0 %v201, 64
    %v203 = vpop.permute.xlu0 %202
    %v205 = vadd.f32 %v177, %v203
    %207 = vrot.lane.b32.xlu0 %v205, 64
    %v208 = vpop.permute.xlu0 %207
    %v210 = vmul.f32 %v199, %v208
    %212 = vrot.lane.b32.xlu0 %v210, 64
    %v213 = vpop.permute.xlu0 %212
    %v215 = vadd.f32 %v149, %v213
    %v216 = vtanh.pop %v215
    %v217 = vsub.f32 1.0, %v199
    %219 = vrot.lane.b32.xlu0 %v216, 96
    %v220 = vpop.permute.xlu0 %219
    %v222 = vmul.f32 %v217, %v220
    %v223 = vmul.f32 %v199, 0.0
    %v224 = vadd.f32 %v222, %v223
    %v225 = vld [vmem:[%s117] sm:$0xf]
    %v227 = vsel %vm135, %v225, 0
    %229 = vmatpush.bf16.msra.mxu0 0
    %230 = vmatpush.bf16.msra.mxu0 0
    %231 = vmatpush.bf16.msra.mxu0 0
    %232 = vmatpush.bf16.msra.mxu0 0
    %233 = vmatpush.bf16.msra.mxu0 0
    %234 = vmatpush.bf16.msra.mxu0 0
    %235 = vmatpush.bf16.msra.mxu0 %v132
    %236 = vmatpush.bf16.msra.mxu0 %v131
    %237 = vmatmul.bf16.gmra.mxu0 %v227
    %v238 = vpop.f32.mrf.mxu0
    %v239 = vadd.f32 %v121, %v238
    %v240 = vpop.f32.mrf.mxu0
    %241 = vdwg.mxu0
    %v242 = vpack.c.bf16 %v224, %v224
    %244 = vrot.lane.b32.xlu0 %v242, 96
    %v245 = vpop.permute.xlu0 %244
    %v247 = vsel %vm135, %v245, 0
    %249 = vmatpush.bf16.msra.mxu0 0
    %250 = vmatpush.bf16.msra.mxu0 0
    %251 = vmatpush.bf16.msra.mxu0 0
    %252 = vmatpush.bf16.msra.mxu0 0
    %253 = vmatpush.bf16.msra.mxu0 0
    %254 = vmatpush.bf16.msra.mxu0 0
    %255 = vmatpush.bf16.msra.mxu0 %v161
    %256 = vmatpush.bf16.msra.mxu0 %v160
    %257 = vmatmul.bf16.gmra.mxu0 %v247
    %v258 = vpop.f32.mrf.mxu0
    %v259 = vadd.f32 0.0, %v258
    %v260 = vpop.f32.mrf.mxu0
    %261 = vdwg.mxu0
    %v262 = vadd.f32 %v239, %v259
    %v263 = vxor.u32 %v262, 2147483648
    %v264 = vmul.f32 %v263, 1.442695
    %v265 = vpow.pop %v264
    %v266 = vadd.f32 %v265, 1.0
    %v267 = vrcp.pop %v266
    %v268 = vmul.f32 %v266, %v267
    %v269 = vsub.f32 1.0, %v268
    %v270 = vmul.f32 %v267, %v269
    %v271 = vadd.f32 %v267, %v270
    %vm272 = vweird.f32 %v266
    %vm273 = vweird.f32 %v267
    %vm274 = vmor %vm272, %vm273
    %v275 = vsel %vm274, %v267, %v271
    %v276 = vand.u32 2147483647, %v266
    %vm277 = vcmp.eq.f32.partialorder %v276, 8.507059e+37
    %v278 = vand.u32 %v266, 2147483648
    %v279 = vor.u32 1.1754944e-38, %v278
    %v280 = vsel %vm277, %v279, %v275
    %v281 = vmul.f32 1.0, %v280
    %v282 = vadd.f32 %v259, %v203
    %284 = vrot.lane.b32.xlu0 %v282, 64
    %v285 = vpop.permute.xlu0 %284
    %v287 = vmul.f32 %v281, %v285
    %289 = vrot.lane.b32.xlu0 %v287, 64
    %v290 = vpop.permute.xlu0 %289
    %v292 = vadd.f32 %v239, %v290
    %v293 = vtanh.pop %v292
    %v294 = vsub.f32 1.0, %v281
    %296 = vrot.lane.b32.xlu0 %v293, 96
    %v297 = vpop.permute.xlu0 %296
    %v299 = vmul.f32 %v294, %v297
    %v300 = vmul.f32 %v281, %v224
    %v301 = vadd.f32 %v299, %v300
    %v302 = vld [vmem:[#allocation3] sm:$0xf]
    %v303 = vld [vmem:[#allocation3 + $0x4] sm:$0xf]
    %v306 = vunpack.c.l.b16 %v302
    %v307 = vunpack.c.l.b16 %v303
    %v308 = vpack.c.b16 %v307, %v306
    %v310 = vsel %vm135, %v308, 0
    %312 = vmatpush.bf16.msra.mxu0 0
    %313 = vmatpush.bf16.msra.mxu0 0
    %314 = vmatpush.bf16.msra.mxu0 0
    %315 = vmatpush.bf16.msra.mxu0 0
    %316 = vmatpush.bf16.msra.mxu0 0
    %317 = vmatpush.bf16.msra.mxu0 0
    %318 = vmatpush.bf16.msra.mxu0 %v132
    %319 = vmatpush.bf16.msra.mxu0 %v131
    %320 = vmatmul.bf16.gmra.mxu0 %v310
    %v321 = vpop.f32.mrf.mxu0
    %v322 = vadd.f32 %v121, %v321
    %v323 = vpop.f32.mrf.mxu0
    %v324 = vadd.f32 %v121, %v323
    %325 = vdwg.mxu0
    %v326 = vpack.c.bf16 %v301, %v301
    %328 = vrot.lane.b32.xlu0 %v326, 96
    %v329 = vpop.permute.xlu0 %328
    %v331 = vsel %vm135, %v329, 0
    %333 = vmatpush.bf16.msra.mxu0 0
    %334 = vmatpush.bf16.msra.mxu0 0
    %335 = vmatpush.bf16.msra.mxu0 0
    %336 = vmatpush.bf16.msra.mxu0 0
    %337 = vmatpush.bf16.msra.mxu0 0
    %338 = vmatpush.bf16.msra.mxu0 0
    %339 = vmatpush.bf16.msra.mxu0 %v161
    %340 = vmatpush.bf16.msra.mxu0 %v160
    %341 = vmatmul.bf16.gmra.mxu0 %v331
    %v342 = vpop.f32.mrf.mxu0
    %v343 = vadd.f32 0.0, %v342
    %v344 = vpop.f32.mrf.mxu0
    %v345 = vadd.f32 0.0, %v344
    %346 = vdwg.mxu0
    %v347 = vadd.f32 %v322, %v343
    %v348 = vadd.f32 %v324, %v345
    %v349 = vxor.u32 %v347, 2147483648
    %v350 = vxor.u32 %v348, 2147483648
    %v351 = vmul.f32 %v349, 1.442695
    %v352 = vpow.pop %v351
    %v353 = vmul.f32 %v350, 1.442695
    %v354 = vpow.pop %v353
    %v355 = vadd.f32 %v352, 1.0
    %v356 = vadd.f32 %v354, 1.0
    %v357 = vrcp.pop %v355
    %v358 = vmul.f32 %v355, %v357
    %v359 = vsub.f32 1.0, %v358
    %v360 = vmul.f32 %v357, %v359
    %v361 = vadd.f32 %v357, %v360
    %vm362 = vweird.f32 %v355
    %vm363 = vweird.f32 %v357
    %vm364 = vmor %vm362, %vm363
    %v365 = vsel %vm364, %v357, %v361
    %v366 = vand.u32 2147483647, %v355
    %vm367 = vcmp.eq.f32.partialorder %v366, 8.507059e+37
    %v368 = vand.u32 %v355, 2147483648
    %v369 = vor.u32 1.1754944e-38, %v368
    %v370 = vsel %vm367, %v369, %v365
    %v371 = vmul.f32 1.0, %v370
    %v372 = vrcp.pop %v356
    %v373 = vmul.f32 %v356, %v372
    %v374 = vsub.f32 1.0, %v373
    %v375 = vmul.f32 %v372, %v374
    %v376 = vadd.f32 %v372, %v375
    %vm377 = vweird.f32 %v356
    %vm378 = vweird.f32 %v372
    %vm379 = vmor %vm377, %vm378
    %v380 = vsel %vm379, %v372, %v376
    %v381 = vand.u32 2147483647, %v356
    %vm382 = vcmp.eq.f32.partialorder %v381, 8.507059e+37
    %v383 = vand.u32 %v356, 2147483648
    %v384 = vor.u32 1.1754944e-38, %v383
    %v385 = vsel %vm382, %v384, %v380
    %v386 = vmul.f32 1.0, %v385
    %v387 = vadd.f32 %v343, %v203
    %v388 = vadd.f32 %v345, %v203
    %391 = vrot.lane.b32.xlu0 %v387, 64
    %v392 = vpop.permute.xlu0 %391
    %393 = vrot.lane.b32.xlu0 %v388, 64
    %v394 = vpop.permute.xlu0 %393
    %v397 = vmul.f32 %v371, %v392
    %v398 = vmul.f32 %v386, %v394
    %401 = vrot.lane.b32.xlu0 %v397, 64
    %v402 = vpop.permute.xlu0 %401
    %403 = vrot.lane.b32.xlu0 %v398, 64
    %v404 = vpop.permute.xlu0 %403
    %v407 = vadd.f32 %v322, %v402
    %v408 = vadd.f32 %v324, %v404
    %v409 = vtanh.pop %v407
    %v410 = vtanh.pop %v408
    %v411 = vsub.f32 1.0, %v371
    %v412 = vsub.f32 1.0, %v386
    %415 = vrot.lane.b32.xlu0 %v409, 96
    %v416 = vpop.permute.xlu0 %415
    %417 = vrot.lane.b32.xlu0 %v410, 96
    %v418 = vpop.permute.xlu0 %417
    %v421 = vmul.f32 %v411, %v416
    %v422 = vmul.f32 %v412, %v418
    %v423 = vmul.f32 %v371, %v301
    %v424 = vmul.f32 %v386, %v301
    %v425 = vadd.f32 %v421, %v423
    %v426 = vadd.f32 %v422, %v424
    %v427 = vpack.c.bf16 %v426, %v425
    %v428 = vld [vmem:[%s9] sm:$0xf]
    %v429 = vld [vmem:[%s9 + $0x4] sm:$0xf]
    %v430 = vld [vmem:[%s9 + $0x8] sm:$0xf]
    %v431 = vld [vmem:[%s9 + $0xc] sm:$0xf]
    %v432 = vld [vmem:[%s10] sm:$0x1]
    %v434 = vperm.slane %v432, 0
    %437 = vrot.lane.b32.xlu0 %v427, 96
    %v438 = vpop.permute.xlu0 %437
    %v443 = vunpack.c.l.b16 %v428
    %v444 = vunpack.c.l.b16 %v429
    %v445 = vunpack.c.l.b16 %v430
    %v446 = vunpack.c.l.b16 %v431
    %v447 = vpack.c.b16 %v444, %v443
    %v448 = vpack.c.b16 %v446, %v445
    %v452 = vsel %vm135, %v438, 0
    %454 = vmatpush.bf16.msra.mxu0 0
    %455 = vmatpush.bf16.msra.mxu0 0
    %456 = vmatpush.bf16.msra.mxu0 0
    %457 = vmatpush.bf16.msra.mxu0 0
    %458 = vmatpush.bf16.msra.mxu0 0
    %459 = vmatpush.bf16.msra.mxu0 0
    %460 = vmatpush.bf16.msra.mxu0 %v448
    %461 = vmatpush.bf16.msra.mxu0 %v447
    %462 = vmatmul.bf16.gmra.mxu0 %v452
    %v463 = vpop.f32.mrf.mxu0
    %v464 = vadd.f32 %v434, %v463
    %v465 = vpop.f32.mrf.mxu0
    %v466 = vadd.f32 %v434, %v465
    %467 = vdwg.mxu0
    %469 = vrot.lane.b32.xlu0 %v466, 4
    %v470 = vpop.permute.xlu0 %469
    %v472 = vsel %vm72, %v464, %v470
    %v473 = vld [vmem:[%s1] sm:$0xff]
    %475 = vset.pattern.permute.xlu0 0
    %476 = vperm.xlu0 %475, %v473
    %v477 = vpop.permute.xlu0 %476
    %v479 = vadd.f32 %v472, %v477
    %vm480 = vcmask 64512
    %481 = vst.msk [vmem:[#allocation6] sm:$0xff] %vm480, %v479
    // Predicated region
    $region50: #{tpu_custom_call.1} parent=1 // pred_check
      _
    $region51: #{tpu_custom_call.1} parent=1 // pred_check_branch
      %483 = sbr.rel (0) target = $region53
    $region52: #{tpu_custom_call.1} parent=1 // pred_region
      %485 = vsyncadd [#allocation5], 0
      %s487 = sshll.u32 [#allocation6], 4
      %s488 = int_to_ptr.vmem [resolvable:$true] %s487
      %s489 = sshll.u32 %s11, 4
      %s490 = int_to_ptr.hbm [resolvable:$true] %s489
      %492 = dma.vmem_to_hbm [thread:$0]  %s488, 128, %s490, [#allocation5]
    $region53: #{tpu_custom_call.1} parent=1 // pred_fallthru
      _
    // Predicated region
    $region54: #{tpu_custom_call.1} parent=1 // pred_check
      _
    $region55: #{tpu_custom_call.1} parent=1 // pred_check_branch
      %494 = sbr.rel (0) target = $region57
    $region56: #{tpu_custom_call.1} parent=1 // pred_region
      %496 = dma.done [#allocation5], 128
    $region57: #{tpu_custom_call.1} parent=1 // pred_fallthru
      _
    %497 = vsyncpa [#allocation4], 1
    %498 = vsyncpa [#allocation5], 1

</llo_original>
